<compile_context>
chip_gen: v7x
topology: tpu7x:2x2x1
jax: 0.10.0
libtpu: 0.0.40
codegen_flags: <defaults>
</compile_context>

<pallas_src>
import functools
import math

import jax
import jax.numpy as jnp
from jax.experimental import pallas as pl
from jax.experimental.pallas import tpu as pltpu

LANES = 128
_LN2 = math.log(2.0)


def _round_up(a, b):
    return -(-a // b) * b


def _make_kernel(tm, valid_rows_last, with_mse):
    """Kernel over (tm, 128) row tiles accumulating into an (nq, 8, 128) block."""
    ragged = valid_rows_last != tm  # trace-time: last block has OOB garbage rows

    def accumulate(o_ref, x, t, valid=None):
        # exp(-|x|) is shared by the numerically stable BCE and the sigmoid.
        e = jnp.exp(-jnp.abs(x))
        bce = jnp.maximum(x, 0.0) - x * t + jnp.log1p(e)
        # sigmoid(x) = where(x>=0, 1, e) / (1 + e); approx reciprocal -> EUP slot.
        sig = jnp.where(x >= 0.0, 1.0, e) * pl.reciprocal(1.0 + e, approx=True)

        quantities = [bce, sig * t, sig, t]
        if with_mse:
            d = x - t
            quantities.append(d * d)

        for q_idx, q in enumerate(quantities):
            if valid is not None:
                # OOB rows may hold arbitrary garbage (NaN/Inf) -> mask every
                # folded quantity; jnp.where does not propagate the unselected NaN.
                q = jnp.where(valid, q, 0.0)
            # (tm, 128) -> (8, 128): vreg-wise VPU adds only (no cross-lane work).
            o_ref[q_idx] += jnp.sum(q.reshape(tm // 8, 8, LANES), axis=0)

    def kernel(x_ref, t_ref, o_ref):
        i = pl.program_id(0)

        @pl.when(i == 0)
        def _init():
            o_ref[...] = jnp.zeros_like(o_ref)

        x = x_ref[...].astype(jnp.float32)
        t = t_ref[...].astype(jnp.float32)

        if not ragged:
            accumulate(o_ref, x, t)
        else:
            last = pl.num_programs(0) - 1

            @pl.when(i < last)
            def _full():
                accumulate(o_ref, x, t)

            @pl.when(i == last)
            def _tail():
                row_ids = jax.lax.broadcasted_iota(jnp.int32, (tm, LANES), 0)
                accumulate(o_ref, x, t, row_ids < valid_rows_last)

    return kernel


@functools.partial(
    jax.jit,
    static_argnames=("bce_weight", "dice_weight", "eps", "mse_weight", "tm_max"),
)
def semseg_loss(outputs, targets, *, bce_weight=1.0, dice_weight=1.0,
                eps=1e-10, mse_weight=0.0, tm_max=2048):
    assert outputs.shape == targets.shape
    n_valid = math.prod(outputs.shape)
    with_mse = mse_weight > 0
    nq = 5 if with_mse else 4

    # tm_max = 2048 rows (1 MiB per f32 input block) is near the HBM-roofline
    # knee; keep <= 2048 on v7x (64 MiB VMEM), optionally 4096 on v5e/v6e.
    tm_max = max(32, (tm_max // 32) * 32)

    rows = -(-n_valid // LANES)

    if rows <= tm_max:
        # Single block covering the whole (possibly row-padded) array.
        tm = _round_up(rows, 8)
        rows_padded = tm
        n_blocks = 1
    else:
        # Balanced tiles (sublane-multiple of 32, safe for any input dtype) so
        # the ragged last block wastes at most ~31 rows of compute.  No padding
        # copy in this branch unless the element count is not lane-aligned.
        n_blocks = -(-rows // tm_max)
        tm = _round_up(-(-rows // n_blocks), 32)
        n_blocks = -(-rows // tm)
        rows_padded = rows

    valid_rows_last = rows_padded - (n_blocks - 1) * tm
    # Explicitly zero-padded elements (lane tail + row round-up).  They go
    # through the unmasked path with x=0, t=0 and are corrected analytically
    # in the epilogue (bce += log 2, sigmoid += 0.5 per padded element).
    n_zero = rows_padded * LANES - n_valid

    def _prep(a):
        flat = a.reshape(-1)  # free: no copy, native dtype
        if n_zero:
            # Fallback copy: only when n_valid % 128 != 0 or the input is tiny
            # (rows rounded up to a multiple of 8).  Lane-aligned inputs stream
            # with zero extra HBM traffic.
            flat = jnp.pad(flat, (0, n_zero))
        return flat.reshape(rows_padded, LANES)

    x = _prep(outputs)
    t = _prep(targets)

    kernel = _make_kernel(tm, valid_rows_last, with_mse)

    tile_spec = pl.BlockSpec((tm, LANES), lambda i: (i, 0))
    out_spec = pl.BlockSpec((nq, 8, LANES), lambda i: (0, 0, 0))

    # NOTE(v7x): a leading CORE_PARALLEL axis (or pl.core_map over a 2-TC mesh)
    # would let both TensorCores stream half the rows; kept as a single
    # well-tested path here since v5e/v6e have one TensorCore.
    out = pl.pallas_call(
        kernel,
        out_shape=jax.ShapeDtypeStruct((nq, 8, LANES), jnp.float32),
        grid_spec=pltpu.PrefetchScalarGridSpec(
            num_scalar_prefetch=0,
            grid=(n_blocks,),
            in_specs=[tile_spec, tile_spec],
            out_specs=out_spec,
        ),
        compiler_params=pltpu.CompilerParams(
            dimension_semantics=("arbitrary",),
            vmem_limit_bytes=32 * 1024 * 1024,
        ),
    )(x, t)

    # Tiny cross-lane/sublane reduction + scalar glue in plain JAX.
    sums = out.sum(axis=(1, 2))
    bce_sum, inter, sig_sum, tgt_sum = sums[0], sums[1], sums[2], sums[3]

    if n_zero:
        bce_sum = bce_sum - jnp.float32(n_zero * _LN2)
        sig_sum = sig_sum - jnp.float32(n_zero * 0.5)

    n = jnp.float32(n_valid)
    bce_loss = bce_sum / n  # BCEWithLogitsLoss mean reduction
    union = sig_sum + tgt_sum + jnp.float32(eps)
    # Matches the reference exactly: eps on the denominator only; -log(0) on an
    # empty intersection (+inf) is inherited from the PyTorch module.
    dice_loss = -jnp.log(2.0 * inter / union)

    loss = bce_loss * bce_weight + dice_loss * dice_weight
    if with_mse:
        loss = loss + (sums[4] / n) * mse_weight
    return loss


def _reference(outputs, targets, *, bce_weight=1.0, dice_weight=1.0,
               eps=1e-10, mse_weight=0.0):
    x = outputs.astype(jnp.float32).reshape(-1)
    t = targets.astype(jnp.float32).reshape(-1)
    bce = jnp.mean(jnp.maximum(x, 0.0) - x * t + jnp.log1p(jnp.exp(-jnp.abs(x))))
    sig = jax.nn.sigmoid(x)
    inter = jnp.sum(sig * t)
    union = jnp.sum(sig) + jnp.sum(t) + eps
    loss = bce * bce_weight + (-jnp.log(2.0 * inter / union)) * dice_weight
    if mse_weight > 0:
        loss = loss + jnp.mean((x - t) ** 2) * mse_weight
    return loss


if __name__ == "__main__":
    key = jax.random.PRNGKey(0)

    # Main case: segmentation-head style (N, C, H, W) logits + binary targets.
    k1, k2 = jax.random.split(key)
    outputs = jax.random.normal(k1, (2, 4, 16, 16), dtype=jnp.float32)
    targets = (jax.random.uniform(k2, (2, 4, 16, 16)) > 0.5).astype(jnp.float32)

    loss = semseg_loss(outputs, targets)
    jax.block_until_ready(loss)
    ref = _reference(outputs, targets)
    # Tolerance loosened slightly for pl.reciprocal(approx=True) in the sigmoid.
    assert jnp.allclose(loss, ref, rtol=5e-3, atol=5e-3), (loss, ref)

    # Extra coverage: multi-block grid with a ragged (in-kernel masked) last block.
    k3, k4 = jax.random.split(k1)
    o2 = jax.random.normal(k3, (2, 4, 40, 80), dtype=jnp.float32)
    t2 = (jax.random.uniform(k4, (2, 4, 40, 80)) > 0.5).astype(jnp.float32)
    l2 = semseg_loss(o2, t2, mse_weight=0.5, tm_max=128)
    r2 = _reference(o2, t2, mse_weight=0.5)
    assert jnp.allclose(l2, r2, rtol=5e-3, atol=5e-3), (l2, r2)

    # Extra coverage: element count not a multiple of 128 (pad fallback +
    # analytic zero-pad correction) with the MSE term enabled.
    k5, k6 = jax.random.split(k2)
    o3 = jax.random.normal(k5, (2, 3, 15, 17), dtype=jnp.float32)
    t3 = (jax.random.uniform(k6, (2, 3, 15, 17)) > 0.5).astype(jnp.float32)
    l3 = semseg_loss(o3, t3, mse_weight=0.25)
    r3 = _reference(o3, t3, mse_weight=0.25)
    assert jnp.allclose(l3, r3, rtol=5e-3, atol=5e-3), (l3, r3)

    print("KERNEL_OK")
</pallas_src>

<mosaic_0001>
module attributes {stable_mosaic.version = 11 : i64} {
  func.func @kernel(%arg0: i32, %arg1: memref<16x128xf32, #tpu.memory_space<vmem>>, %arg2: memref<16x128xf32, #tpu.memory_space<vmem>>, %arg3: memref<4x8x128xf32, #tpu.memory_space<vmem>>) attributes {dimension_semantics = [#tpu.dimension_semantics<arbitrary>], iteration_bounds = array<i64: 1>, scalar_prefetch = 0 : i64, scratch_operands = 0 : i64, tpu.core_type = #tpu.core_type<tc>, window_params = [{transform_indices = @transform_0, window_bounds = array<i64: 16, 128>}, {transform_indices = @transform_1, window_bounds = array<i64: 16, 128>}, {pipeline_mode = #tpu.pipeline_mode<synchronous>, transform_indices = @transform_2, window_bounds = array<i64: 4, 8, 128>}]} {
    %c0_i32 = arith.constant 0 : i32
    %0 = arith.cmpi eq, %arg0, %c0_i32 : i32
    %1 = arith.extui %0 : i1 to i32
    %c0_i32_0 = arith.constant 0 : i32
    %2 = arith.cmpi ne, %1, %c0_i32_0 : i32
    scf.if %2 {
      %cst_33 = arith.constant 0.000000e+00 : f32
      %56 = vector.broadcast %cst_33 : f32 to vector<4x8x128xf32>
      %c0_34 = arith.constant 0 : index
      %c0_35 = arith.constant 0 : index
      %c0_36 = arith.constant 0 : index
      %57 = vector.load %arg3[%c0_34, %c0_35, %c0_36] : memref<4x8x128xf32, #tpu.memory_space<vmem>>, vector<4x8x128xf32>
      tpu.vector_store %arg3[%c0_34, %c0_35, %c0_36], %56 {strides = array<i32>} : memref<4x8x128xf32, #tpu.memory_space<vmem>>, vector<4x8x128xf32>,
    } else {
    }
    %c0 = arith.constant 0 : index
    %c0_1 = arith.constant 0 : index
    %3 = vector.load %arg1[%c0, %c0_1] : memref<16x128xf32, #tpu.memory_space<vmem>>, vector<16x128xf32>
    %c0_2 = arith.constant 0 : index
    %c0_3 = arith.constant 0 : index
    %4 = vector.load %arg2[%c0_2, %c0_3] : memref<16x128xf32, #tpu.memory_space<vmem>>, vector<16x128xf32>
    %5 = math.absf %3 : vector<16x128xf32>
    %cst = arith.constant 0.000000e+00 : f32
    %6 = vector.broadcast %cst : f32 to vector<16x128xf32>
    %7 = arith.subf %6, %5 : vector<16x128xf32>
    %8 = math.exp %7 : vector<16x128xf32>
    %cst_4 = arith.constant 0.000000e+00 : f32
    %9 = vector.broadcast %cst_4 : f32 to vector<16x128xf32>
    %10 = arith.maximumf %3, %9 : vector<16x128xf32>
    %11 = arith.mulf %3, %4 : vector<16x128xf32>
    %12 = arith.subf %10, %11 : vector<16x128xf32>
    %13 = math.log1p %8 : vector<16x128xf32>
    %14 = arith.addf %12, %13 : vector<16x128xf32>
    %cst_5 = arith.constant 0.000000e+00 : f32
    %15 = vector.broadcast %cst_5 : f32 to vector<16x128xf32>
    %16 = arith.cmpf oge, %3, %15 : vector<16x128xf32>
    %cst_6 = arith.constant 1.000000e+00 : f32
    %17 = vector.broadcast %cst_6 : f32 to vector<16x128xf32>
    %18 = arith.select %16, %17, %8 : vector<16x128xi1>, vector<16x128xf32>
    %cst_7 = arith.constant 1.000000e+00 : f32
    %19 = vector.broadcast %cst_7 : f32 to vector<16x128xf32>
    %20 = arith.addf %19, %8 : vector<16x128xf32>
    %21 = tpu.reciprocal %20 {approx = true} : vector<16x128xf32> -> vector<16x128xf32>
    %22 = arith.mulf %18, %21 : vector<16x128xf32>
    %23 = arith.mulf %22, %4 : vector<16x128xf32>
    %c0_8 = arith.constant 0 : index
    %c0_9 = arith.constant 0 : index
    %c0_10 = arith.constant 0 : index
    %24 = vector.load %arg3[%c0_8, %c0_9, %c0_10] : memref<4x8x128xf32, #tpu.memory_space<vmem>>, vector<1x8x128xf32>
    %25 = vector.shape_cast %24 : vector<1x8x128xf32> to vector<8x128xf32>
    %26 = vector.shape_cast %14 : vector<16x128xf32> to vector<2x8x128xf32>
    %cst_11 = arith.constant dense<0.000000e+00> : vector<8x128xf32>
    %27 = vector.multi_reduction <add>, %26, %cst_11 [0] : vector<2x8x128xf32> to vector<8x128xf32>
    %28 = arith.addf %25, %27 : vector<8x128xf32>
    %c0_12 = arith.constant 0 : index
    %c0_13 = arith.constant 0 : index
    %c0_14 = arith.constant 0 : index
    %29 = vector.load %arg3[%c0_12, %c0_13, %c0_14] : memref<4x8x128xf32, #tpu.memory_space<vmem>>, vector<1x8x128xf32>
    %30 = vector.shape_cast %29 : vector<1x8x128xf32> to vector<8x128xf32>
    %31 = vector.shape_cast %28 : vector<8x128xf32> to vector<1x8x128xf32>
    tpu.vector_store %arg3[%c0_12, %c0_13, %c0_14], %31 {strides = array<i32>} : memref<4x8x128xf32, #tpu.memory_space<vmem>>, vector<1x8x128xf32>,
    %c1 = arith.constant 1 : index
    %c0_15 = arith.constant 0 : index
    %c0_16 = arith.constant 0 : index
    %32 = vector.load %arg3[%c1, %c0_15, %c0_16] : memref<4x8x128xf32, #tpu.memory_space<vmem>>, vector<1x8x128xf32>
    %33 = vector.shape_cast %32 : vector<1x8x128xf32> to vector<8x128xf32>
    %34 = vector.shape_cast %23 : vector<16x128xf32> to vector<2x8x128xf32>
    %cst_17 = arith.constant dense<0.000000e+00> : vector<8x128xf32>
    %35 = vector.multi_reduction <add>, %34, %cst_17 [0] : vector<2x8x128xf32> to vector<8x128xf32>
    %36 = arith.addf %33, %35 : vector<8x128xf32>
    %c1_18 = arith.constant 1 : index
    %c0_19 = arith.constant 0 : index
    %c0_20 = arith.constant 0 : index
    %37 = vector.load %arg3[%c1_18, %c0_19, %c0_20] : memref<4x8x128xf32, #tpu.memory_space<vmem>>, vector<1x8x128xf32>
    %38 = vector.shape_cast %37 : vector<1x8x128xf32> to vector<8x128xf32>
    %39 = vector.shape_cast %36 : vector<8x128xf32> to vector<1x8x128xf32>
    tpu.vector_store %arg3[%c1_18, %c0_19, %c0_20], %39 {strides = array<i32>} : memref<4x8x128xf32, #tpu.memory_space<vmem>>, vector<1x8x128xf32>,
    %c2 = arith.constant 2 : index
    %c0_21 = arith.constant 0 : index
    %c0_22 = arith.constant 0 : index
    %40 = vector.load %arg3[%c2, %c0_21, %c0_22] : memref<4x8x128xf32, #tpu.memory_space<vmem>>, vector<1x8x128xf32>
    %41 = vector.shape_cast %40 : vector<1x8x128xf32> to vector<8x128xf32>
    %42 = vector.shape_cast %22 : vector<16x128xf32> to vector<2x8x128xf32>
    %cst_23 = arith.constant dense<0.000000e+00> : vector<8x128xf32>
    %43 = vector.multi_reduction <add>, %42, %cst_23 [0] : vector<2x8x128xf32> to vector<8x128xf32>
    %44 = arith.addf %41, %43 : vector<8x128xf32>
    %c2_24 = arith.constant 2 : index
    %c0_25 = arith.constant 0 : index
    %c0_26 = arith.constant 0 : index
    %45 = vector.load %arg3[%c2_24, %c0_25, %c0_26] : memref<4x8x128xf32, #tpu.memory_space<vmem>>, vector<1x8x128xf32>
    %46 = vector.shape_cast %45 : vector<1x8x128xf32> to vector<8x128xf32>
    %47 = vector.shape_cast %44 : vector<8x128xf32> to vector<1x8x128xf32>
    tpu.vector_store %arg3[%c2_24, %c0_25, %c0_26], %47 {strides = array<i32>} : memref<4x8x128xf32, #tpu.memory_space<vmem>>, vector<1x8x128xf32>,
    %c3 = arith.constant 3 : index
    %c0_27 = arith.constant 0 : index
    %c0_28 = arith.constant 0 : index
    %48 = vector.load %arg3[%c3, %c0_27, %c0_28] : memref<4x8x128xf32, #tpu.memory_space<vmem>>, vector<1x8x128xf32>
    %49 = vector.shape_cast %48 : vector<1x8x128xf32> to vector<8x128xf32>
    %50 = vector.shape_cast %4 : vector<16x128xf32> to vector<2x8x128xf32>
    %cst_29 = arith.constant dense<0.000000e+00> : vector<8x128xf32>
    %51 = vector.multi_reduction <add>, %50, %cst_29 [0] : vector<2x8x128xf32> to vector<8x128xf32>
    %52 = arith.addf %49, %51 : vector<8x128xf32>
    %c3_30 = arith.constant 3 : index
    %c0_31 = arith.constant 0 : index
    %c0_32 = arith.constant 0 : index
    %53 = vector.load %arg3[%c3_30, %c0_31, %c0_32] : memref<4x8x128xf32, #tpu.memory_space<vmem>>, vector<1x8x128xf32>
    %54 = vector.shape_cast %53 : vector<1x8x128xf32> to vector<8x128xf32>
    %55 = vector.shape_cast %52 : vector<8x128xf32> to vector<1x8x128xf32>
    tpu.vector_store %arg3[%c3_30, %c0_31, %c0_32], %55 {strides = array<i32>} : memref<4x8x128xf32, #tpu.memory_space<vmem>>, vector<1x8x128xf32>,
    return
  }
  func.func @transform_0(%arg0: i32) -> (i32, i32) {
    %c0_i32 = arith.constant 0 : i32
    %c0_i32_0 = arith.constant 0 : i32
    return %arg0, %c0_i32 : i32, i32
  }
  func.func @transform_1(%arg0: i32) -> (i32, i32) {
    %c0_i32 = arith.constant 0 : i32
    %c0_i32_0 = arith.constant 0 : i32
    return %arg0, %c0_i32 : i32, i32
  }
  func.func @transform_2(%arg0: i32) -> (i32, i32, i32) {
    %c0_i32 = arith.constant 0 : i32
    %c0_i32_0 = arith.constant 0 : i32
    %c0_i32_1 = arith.constant 0 : i32
    %c0_i32_2 = arith.constant 0 : i32
    return %c0_i32, %c0_i32_0, %c0_i32_1 : i32, i32, i32
  }
}

</mosaic_0001>

<llo_original>
// kernel: semseg_loss.1
$region0: #{semseg_loss.1}
  #allocation0 [shape = 'u32[]', space=smem, size = 0x4, offset = 0x4, fixed_abs, tag = 'smem constant byte address 0x4 - core index']
  #allocation1 [shape = 'u32[144,128]{1,0:T(1,128)}', space=vmem, size = 0x12000, scoped, tag = 'internal scratch']
  %s0 = inlined_call_operand.vmem [shape: f32[16,128], index: 0, kind: input, shape index: {}]
  %s1 = inlined_call_operand.vmem [shape: f32[16,128], index: 1, kind: input, shape index: {}]
  %s2 = inlined_call_operand.vmem [shape: f32[4,8,128], index: 2, kind: output, shape index: {}]
  %s3 = sld [smem:[#allocation0]]
  $region22: #{semseg_loss.1} parent=0
    _
  %s5 = ssub.s32 1, %s3
  %s6 = scalar_select 0, %s5, %s3
  // Predicated region
  $region2: #{semseg_loss.1} parent=0 // pred_check
    _
  $region3: #{semseg_loss.1} parent=0 // pred_check_branch
    %8 = sbr.rel (0) target = $region5
  $region4: #{semseg_loss.1} parent=0 // pred_region
    _
  $region5: #{semseg_loss.1} parent=0 // pred_fallthru
    _
  // Predicated region
  $region6: #{semseg_loss.1} parent=0 // pred_check
    _
  $region7: #{semseg_loss.1} parent=0 // pred_check_branch
    %10 = sbr.rel (0) target = $region9
  $region8: #{semseg_loss.1} parent=0 // pred_region
    _
  $region9: #{semseg_loss.1} parent=0 // pred_fallthru
    _
  %p11 = scmp.eq.s32.totalorder 0, 0
  // Predicated region
  $region10: #{semseg_loss.1} parent=0 // pred_check
    %p12 = pneg %p11
  $region11: #{semseg_loss.1} parent=0 // pred_check_branch
    %14 = sbr.rel (%p12) target = $region13
  $region12: #{semseg_loss.1} parent=0 // pred_region
    %15 = vst [vmem:[%s2] sm:$0xff] 0.0
    %16 = vst [vmem:[%s2 + $0x8] sm:$0xff] 0.0
    %17 = vst [vmem:[%s2 + $0x10] sm:$0xff] 0.0
    %18 = vst [vmem:[%s2 + $0x18] sm:$0xff] 0.0
  $region13: #{semseg_loss.1} parent=0 // pred_fallthru
    _
  %v19 = vld [vmem:[%s0] sm:$0xff]
  %v20 = vld [vmem:[%s0 + $0x8] sm:$0xff]
  %v21 = vld [vmem:[%s1] sm:$0xff]
  %v22 = vld [vmem:[%s1 + $0x8] sm:$0xff]
  %v23 = vand.u32 2147483647, %v19
  %v24 = vand.u32 2147483647, %v20
  %v25 = vsub.f32 0.0, %v23
  %v26 = vsub.f32 0.0, %v24
  %v27 = vmul.f32 %v25, 1.442695
  %v28 = vpow.pop %v27
  %v29 = vmul.f32 %v26, 1.442695
  %v30 = vpow.pop %v29
  %v31 = vmax.f32 %v19, 0.0
  %v32 = vmax.f32 %v20, 0.0
  %v33 = vmul.f32 %v19, %v21
  %v34 = vmul.f32 %v20, %v22
  %v35 = vsub.f32 %v31, %v33
  %v36 = vsub.f32 %v32, %v34
  %v37 = vadd.f32 %v28, 1.0
  %v38 = vlog2.pop %v37
  %v39 = vmul.f32 %v38, 0.6931472
  %v40 = vmul.f32 -0.5, %v28
  %v41 = vadd.f32 %v40, 1.0
  %v42 = vmul.f32 %v41, %v28
  %v43 = vand.u32 2147483647, %v28
  %vm44 = vcmp.lt.f32.partialorder %v43, 0.0004427343
  %v45 = vsel %vm44, %v42, %v39
  %v46 = vadd.f32 %v30, 1.0
  %v47 = vlog2.pop %v46
  %v48 = vmul.f32 %v47, 0.6931472
  %v49 = vmul.f32 -0.5, %v30
  %v50 = vadd.f32 %v49, 1.0
  %v51 = vmul.f32 %v50, %v30
  %v52 = vand.u32 2147483647, %v30
  %vm53 = vcmp.lt.f32.partialorder %v52, 0.0004427343
  %v54 = vsel %vm53, %v51, %v48
  %v55 = vadd.f32 %v35, %v45
  %v56 = vadd.f32 %v36, %v54
  %vm57 = vcmp.ge.f32.partialorder %v19, 0.0
  %vm58 = vcmp.ge.f32.partialorder %v20, 0.0
  %v59 = vsel %vm57, 1.0, %v28
  %v60 = vsel %vm58, 1.0, %v30
  %v61 = vadd.f32 %v28, 1.0
  %v62 = vadd.f32 %v30, 1.0
  %v63 = vrcp.pop %v61
  %v64 = vrcp.pop %v62
  %v65 = vmul.f32 %v59, %v63
  %v66 = vmul.f32 %v60, %v64
  %v67 = vmul.f32 %v65, %v21
  %v68 = vmul.f32 %v66, %v22
  %v69 = vld [vmem:[%s2] sm:$0xff]
  %v70 = vadd.f32 %v55, %v56
  %v71 = vadd.f32 %v69, %v70
  %72 = vst [vmem:[%s2] sm:$0xff] %v71
  %s73 = scalar_lea.vmem %s2, 8
  %v74 = vld [vmem:[%s73] sm:$0xff]
  %v75 = vadd.f32 %v67, %v68
  %v76 = vadd.f32 %v74, %v75
  %77 = vst [vmem:[%s73] sm:$0xff] %v76
  %s78 = scalar_lea.vmem %s2, 16
  %v79 = vld [vmem:[%s78] sm:$0xff]
  %v80 = vadd.f32 %v65, %v66
  %v81 = vadd.f32 %v79, %v80
  %82 = vst [vmem:[%s78] sm:$0xff] %v81
  %s83 = scalar_lea.vmem %s2, 24
  %v84 = vld [vmem:[%s83] sm:$0xff]
  %v85 = vadd.f32 %v21, %v22
  %v86 = vadd.f32 %v84, %v85
  %87 = vst [vmem:[%s83] sm:$0xff] %v86
  // Predicated region
  $region14: #{semseg_loss.1} parent=0 // pred_check
    _
  $region15: #{semseg_loss.1} parent=0 // pred_check_branch
    %89 = sbr.rel (0) target = $region17
  $region16: #{semseg_loss.1} parent=0 // pred_region
    _
  $region17: #{semseg_loss.1} parent=0 // pred_fallthru
    _
  // Predicated region
  $region18: #{semseg_loss.1} parent=0 // pred_check
    _
  $region19: #{semseg_loss.1} parent=0 // pred_check_branch
    %91 = sbr.rel (0) target = $region21
  $region20: #{semseg_loss.1} parent=0 // pred_region
    _
  $region21: #{semseg_loss.1} parent=0 // pred_fallthru
    _

</llo_original>
